<compile_context>
chip_gen: v5e
topology: v5e:2x2
jax: 0.10.0
libtpu: 0.0.40
codegen_flags: <defaults>
</compile_context>

<pallas_src>
import functools

import jax
import jax.numpy as jnp
from jax.experimental import pallas as pl
from jax.experimental.pallas import tpu as pltpu


def _round_up(x, m):
    return (x + m - 1) // m * m


# ----------------------------- Pallas kernel --------------------------------

def _mm_sum_kernel(x_ge_ref, x_cs_ref, *refs, n_layers, b_offs, b_widths,
                   mxu_dtype):
    """Fused forward for one batch tile.

    refs = (W0_ge, W0_cs, W_1, ..., W_{n_layers-1}, W_clf, bias_pack, out_ref)
    W0_ge / W0_cs are the layer-0 column slabs (sum == block-diagonal fusion
    of the two SubNets); W_i (i>=1) are block-diagonal (ge (+) cs) fused
    weights; W_clf is the stacked classifier weight realizing out_ge + out_cs.
    """
    w0_ge_ref, w0_cs_ref = refs[0], refs[1]
    hidden_w_refs = refs[2:n_layers + 1]          # layers 1 .. n_layers-1
    w_clf_ref = refs[n_layers + 1]
    b_ref = refs[n_layers + 2]
    out_ref = refs[n_layers + 3]

    def bias(i):
        off = b_offs[i]
        return b_ref[:, off:off + b_widths[i]]    # static, 128-aligned slice

    # Layer 0: two dots on the raw (unpadded, un-concatenated) modality
    # inputs; their sum lands directly in the fused [h_ge | h_cs | 0] layout.
    z = (jnp.dot(x_ge_ref[...].astype(mxu_dtype), w0_ge_ref[...],
                 preferred_element_type=jnp.float32)
         + jnp.dot(x_cs_ref[...].astype(mxu_dtype), w0_cs_ref[...],
                   preferred_element_type=jnp.float32)
         + bias(0))
    h = jnp.maximum(z, 0.0)                       # ReLU; Dropout = identity (eval)

    for i in range(1, n_layers):
        z = jnp.dot(h.astype(mxu_dtype), hidden_w_refs[i - 1][...],
                    preferred_element_type=jnp.float32) + bias(i)
        h = jnp.maximum(z, 0.0)

    logits = jnp.dot(h.astype(mxu_dtype), w_clf_ref[...],
                     preferred_element_type=jnp.float32) + bias(n_layers)

    # sigmoid(x) = 0.5 * tanh(x/2) + 0.5 : tanh runs on the EUP slot (free vs.
    # a VALU divide sequence) and matches jax.nn.sigmoid to ~f32 rounding.
    out_ref[...] = (0.5 * jnp.tanh(0.5 * logits) + 0.5).astype(out_ref.dtype)


# --------------------------- parameter fusion --------------------------------

def fuse_params(P, ge_in, cs_in, ge_layers, cs_layers, out_dim,
                matmul_dtype=jnp.bfloat16, out_dtype=jnp.bfloat16):
    """Precompute fused / padded weights + packed biases (done once)."""
    assert ge_layers[-1] == cs_layers[-1], "out_ge + out_cs needs equal last widths"
    n_layers = len(ge_layers)
    assert len(cs_layers) == n_layers

    hidden = list(zip(ge_layers, cs_layers))                  # per-level (ge, cs)
    widths_p = [_round_up(a + b, 128) for (a, b) in hidden]   # lane-dense widths
    out_p = _round_up(out_dim, 128)
    f32 = jnp.float32

    # Layer 0: two column-slabs, one per modality (kernel dots the raw inputs
    # against them -> no wrapper-side concat/pad of X_ge|X_cs).
    ge_o, cs_o = hidden[0]
    w0_ge = jnp.zeros((ge_in, widths_p[0]), f32).at[:, :ge_o].set(P["ge_w0"])
    w0_cs = jnp.zeros((cs_in, widths_p[0]), f32).at[:, ge_o:ge_o + cs_o].set(P["cs_w0"])
    weights = [w0_ge.astype(matmul_dtype), w0_cs.astype(matmul_dtype)]
    b0 = (jnp.zeros((widths_p[0],), f32)
          .at[:ge_o].set(P["ge_b0"]).at[ge_o:ge_o + cs_o].set(P["cs_b0"]))
    bias_segs = [b0]

    # Layers 1..n-1: block-diagonal (ge (+) cs) fused weights.
    for i in range(1, n_layers):
        ge_i, cs_i = hidden[i - 1]
        ge_o, cs_o = hidden[i]
        W = jnp.zeros((widths_p[i - 1], widths_p[i]), f32)
        W = W.at[:ge_i, :ge_o].set(P[f"ge_w{i}"])
        W = W.at[ge_i:ge_i + cs_i, ge_o:ge_o + cs_o].set(P[f"cs_w{i}"])
        weights.append(W.astype(matmul_dtype))
        b = (jnp.zeros((widths_p[i],), f32)
             .at[:ge_o].set(P[f"ge_b{i}"]).at[ge_o:ge_o + cs_o].set(P[f"cs_b{i}"]))
        bias_segs.append(b)

    # clf(out_ge + out_cs) == [h_ge | h_cs] @ [[W_clf]; [W_clf]] + b_clf
    L = ge_layers[-1]
    Wc = jnp.zeros((widths_p[-1], out_p), f32)
    Wc = Wc.at[:L, :out_dim].set(P["clf_w"])
    Wc = Wc.at[L:2 * L, :out_dim].set(P["clf_w"])
    weights.append(Wc.astype(matmul_dtype))
    bias_segs.append(jnp.zeros((out_p,), f32).at[:out_dim].set(P["clf_b"]))

    b_offs, b_widths, off = [], [], 0
    for b in bias_segs:
        b_offs.append(off)
        b_widths.append(b.shape[0])
        off += b.shape[0]
    bias_pack = jnp.concatenate(bias_segs).reshape(1, -1)

    return dict(
        weights=tuple(weights), bias_pack=bias_pack,
        b_offs=tuple(b_offs), b_widths=tuple(b_widths),
        n_layers=n_layers, ge_in=ge_in, cs_in=cs_in,
        out_p=out_p, out_dim=out_dim,
        matmul_dtype=matmul_dtype, out_dtype=out_dtype,
    )


# ------------------------------- wrapper --------------------------------------

def mm_sum_net(X_ge, X_cs, fused, *, tb=None):
    """Returns the lane-dense (B_pad, out_p) output slab (dtype = out_dtype).

    The valid region is [:B, :fused['out_dim']]; leaving the slice to the
    consumer lets XLA fuse it instead of paying an extra HBM pass.
    """
    B = X_ge.shape[0]
    ge_in, cs_in = fused["ge_in"], fused["cs_in"]
    out_p = fused["out_p"]
    mxu_dtype = fused["matmul_dtype"]

    # Row alignment follows the MXU operand dtype (8 sublanes x 32b packing).
    row_align = 8 * max(1, 4 // jnp.dtype(mxu_dtype).itemsize)

    if tb is None:
        if B <= 512:
            tb = max(B, 1)                 # one tile: per-step overhead dominates
        else:
            # >=4 grid steps -> >=2 pipelined steps per TensorCore on v7x
            # (DMA/compute overlap); 256-1024 rows/tile amortizes the
            # ~0.35us/step overhead on all generations.
            tb = min(1024, max(256, pl.cdiv(B, 4)))
    tb = max(row_align, _round_up(min(tb, max(B, 1)), row_align))
    B_pad = _round_up(B, tb)

    if B_pad != B:
        # Only a handful of rows at native (unpadded) width -- far cheaper
        # than the old 128-lane input slab.
        X_ge = jnp.pad(X_ge, ((0, B_pad - B), (0, 0)))
        X_cs = jnp.pad(X_cs, ((0, B_pad - B), (0, 0)))

    kernel = functools.partial(
        _mm_sum_kernel,
        n_layers=fused["n_layers"],
        b_offs=fused["b_offs"],
        b_widths=fused["b_widths"],
        mxu_dtype=mxu_dtype,
    )

    weights = fused["weights"]
    # Constant-index weight/bias specs stay VMEM-resident across the grid.
    # (If production widths grow, add pipeline_mode=pl.Buffered(1) here to
    # halve their residency -- relevant for v7x's 64 MiB VMEM.)
    in_specs = (
        [pl.BlockSpec((tb, ge_in), lambda i: (i, 0)),
         pl.BlockSpec((tb, cs_in), lambda i: (i, 0))]
        + [pl.BlockSpec(w.shape, lambda i: (0, 0)) for w in weights]
        + [pl.BlockSpec(fused["bias_pack"].shape, lambda i: (0, 0))]
    )
    out_spec = pl.BlockSpec((tb, out_p), lambda i: (i, 0))

    out = pl.pallas_call(
        kernel,
        out_shape=jax.ShapeDtypeStruct((B_pad, out_p), fused["out_dtype"]),
        grid=(B_pad // tb,),
        in_specs=in_specs,
        out_specs=out_spec,
        compiler_params=pltpu.CompilerParams(dimension_semantics=("parallel",)),
    )(X_ge, X_cs, *weights, fused["bias_pack"])

    return out


# --------------------------- parameter construction --------------------------

def _linear(key, fan_in, fan_out):
    kw, kb = jax.random.split(key)
    bound = 1.0 / float(fan_in) ** 0.5
    w = jax.random.uniform(kw, (fan_in, fan_out), jnp.float32, -bound, bound)
    b = jax.random.uniform(kb, (fan_out,), jnp.float32, -bound, bound)
    return w, b


def make_params(key, ge_in, cs_in, ge_layers, cs_layers, out_dim):
    n = len(ge_layers)
    keys = jax.random.split(key, 2 * n + 1)
    P = {}
    prev = ge_in
    for i, width in enumerate(ge_layers):
        P[f"ge_w{i}"], P[f"ge_b{i}"] = _linear(keys[i], prev, width)
        prev = width
    prev = cs_in
    for i, width in enumerate(cs_layers):
        P[f"cs_w{i}"], P[f"cs_b{i}"] = _linear(keys[n + i], prev, width)
        prev = width
    P["clf_w"], P["clf_b"] = _linear(keys[2 * n], ge_layers[-1], out_dim)
    return P


# ------------------------------ pure-JAX reference ---------------------------

def reference_forward(X_ge, X_cs, P, ge_layers, cs_layers):
    h = X_ge
    for i in range(len(ge_layers)):
        h = jnp.maximum(h @ P[f"ge_w{i}"] + P[f"ge_b{i}"], 0.0)
    g = X_cs
    for i in range(len(cs_layers)):
        g = jnp.maximum(g @ P[f"cs_w{i}"] + P[f"cs_b{i}"], 0.0)
    out = (h + g) @ P["clf_w"] + P["clf_b"]
    return jax.nn.sigmoid(out)                     # eval-mode sigmoid


# ---------------------------------- main --------------------------------------

if __name__ == "__main__":
    B, GE_IN, CS_IN = 16, 40, 24
    GE_LAYERS, CS_LAYERS = (64, 32), (48, 32)
    OUT_DIM = 16

    root = jax.random.PRNGKey(0)
    k_ge, k_cs, k_par = jax.random.split(root, 3)

    X_ge = jax.random.normal(k_ge, (B, GE_IN), jnp.float32)
    X_cs = jax.random.normal(k_cs, (B, CS_IN), jnp.float32)
    params = make_params(k_par, GE_IN, CS_IN, GE_LAYERS, CS_LAYERS, OUT_DIM)

    # bf16 MXU operands (f32 accumulation) -- the native MXU dtype on
    # v5e/v6e/v7x -- and bf16 output (range [0,1]) to halve write traffic.
    fused = fuse_params(params, GE_IN, CS_IN, GE_LAYERS, CS_LAYERS, OUT_DIM,
                        matmul_dtype=jnp.bfloat16, out_dtype=jnp.bfloat16)

    out_slab = mm_sum_net(X_ge, X_cs, fused)       # (B_pad, 128) lane-dense slab
    out_slab = jax.block_until_ready(out_slab)
    out = out_slab[:B, :OUT_DIM].astype(jnp.float32)

    ref = reference_forward(X_ge, X_cs, params, GE_LAYERS, CS_LAYERS)
    assert out.shape == (B, OUT_DIM)
    # bf16 MXU operands + bf16 output => looser tolerance than an f32 run.
    assert jnp.allclose(out, ref, atol=3e-2, rtol=3e-2), "mismatch vs JAX reference"

    print("KERNEL_OK")
</pallas_src>

<mosaic_0001>
module attributes {stable_mosaic.version = 11 : i64} {
  func.func @_mm_sum_kernel(%arg0: i32, %arg1: memref<16x40xf32, #tpu.memory_space<vmem>>, %arg2: memref<16x24xf32, #tpu.memory_space<vmem>>, %arg3: memref<40x128xbf16, #tpu.memory_space<vmem>>, %arg4: memref<24x128xbf16, #tpu.memory_space<vmem>>, %arg5: memref<128x128xbf16, #tpu.memory_space<vmem>>, %arg6: memref<128x128xbf16, #tpu.memory_space<vmem>>, %arg7: memref<1x384xf32, #tpu.memory_space<vmem>>, %arg8: memref<16x128xbf16, #tpu.memory_space<vmem>>) attributes {dimension_semantics = [#tpu.dimension_semantics<parallel>], iteration_bounds = array<i64: 1>, scalar_prefetch = 0 : i64, scratch_operands = 0 : i64, tpu.core_type = #tpu.core_type<tc>, window_params = [{transform_indices = @transform_0, window_bounds = array<i64: 16, 40>}, {transform_indices = @transform_1, window_bounds = array<i64: 16, 24>}, {pipeline_mode = #tpu.pipeline_mode<synchronous>, transform_indices = @transform_2, window_bounds = array<i64: 40, 128>}, {pipeline_mode = #tpu.pipeline_mode<synchronous>, transform_indices = @transform_3, window_bounds = array<i64: 24, 128>}, {pipeline_mode = #tpu.pipeline_mode<synchronous>, transform_indices = @transform_4, window_bounds = array<i64: 128, 128>}, {pipeline_mode = #tpu.pipeline_mode<synchronous>, transform_indices = @transform_5, window_bounds = array<i64: 128, 128>}, {pipeline_mode = #tpu.pipeline_mode<synchronous>, transform_indices = @transform_6, window_bounds = array<i64: 1, 384>}, {transform_indices = @transform_7, window_bounds = array<i64: 16, 128>}]} {
    %c0 = arith.constant 0 : index
    %c0_0 = arith.constant 0 : index
    %0 = vector.load %arg1[%c0, %c0_0] : memref<16x40xf32, #tpu.memory_space<vmem>>, vector<16x40xf32>
    %1 = arith.truncf %0 : vector<16x40xf32> to vector<16x40xbf16>
    %c0_1 = arith.constant 0 : index
    %c0_2 = arith.constant 0 : index
    %2 = vector.load %arg3[%c0_1, %c0_2] : memref<40x128xbf16, #tpu.memory_space<vmem>>, vector<40x128xbf16>
    %cst = arith.constant dense<0.000000e+00> : vector<16x128xf32>
    %3 = tpu.matmul %1, %2, %cst {dimension_numbers = #tpu.dot_dimension_numbers<[1], [0], [0], [1], [0, 0, 1, 1], [], []>} : vector<16x40xbf16>, vector<40x128xbf16>, vector<16x128xf32> -> vector<16x128xf32>
    %c0_3 = arith.constant 0 : index
    %c0_4 = arith.constant 0 : index
    %4 = vector.load %arg2[%c0_3, %c0_4] : memref<16x24xf32, #tpu.memory_space<vmem>>, vector<16x24xf32>
    %5 = arith.truncf %4 : vector<16x24xf32> to vector<16x24xbf16>
    %c0_5 = arith.constant 0 : index
    %c0_6 = arith.constant 0 : index
    %6 = vector.load %arg4[%c0_5, %c0_6] : memref<24x128xbf16, #tpu.memory_space<vmem>>, vector<24x128xbf16>
    %cst_7 = arith.constant dense<0.000000e+00> : vector<16x128xf32>
    %7 = tpu.matmul %5, %6, %cst_7 {dimension_numbers = #tpu.dot_dimension_numbers<[1], [0], [0], [1], [0, 0, 1, 1], [], []>} : vector<16x24xbf16>, vector<24x128xbf16>, vector<16x128xf32> -> vector<16x128xf32>
    %8 = arith.addf %3, %7 : vector<16x128xf32>
    %c0_8 = arith.constant 0 : index
    %c0_9 = arith.constant 0 : index
    %9 = vector.load %arg7[%c0_8, %c0_9] : memref<1x384xf32, #tpu.memory_space<vmem>>, vector<1x128xf32>
    %10 = vector.broadcast %9 : vector<1x128xf32> to vector<16x128xf32>
    %11 = arith.addf %8, %10 : vector<16x128xf32>
    %cst_10 = arith.constant 0.000000e+00 : f32
    %12 = vector.broadcast %cst_10 : f32 to vector<16x128xf32>
    %13 = arith.maximumf %11, %12 : vector<16x128xf32>
    %14 = arith.truncf %13 : vector<16x128xf32> to vector<16x128xbf16>
    %c0_11 = arith.constant 0 : index
    %c0_12 = arith.constant 0 : index
    %15 = vector.load %arg5[%c0_11, %c0_12] : memref<128x128xbf16, #tpu.memory_space<vmem>>, vector<128x128xbf16>
    %cst_13 = arith.constant dense<0.000000e+00> : vector<16x128xf32>
    %16 = tpu.matmul %14, %15, %cst_13 {dimension_numbers = #tpu.dot_dimension_numbers<[1], [0], [0], [1], [0, 0, 1, 1], [], []>} : vector<16x128xbf16>, vector<128x128xbf16>, vector<16x128xf32> -> vector<16x128xf32>
    %c0_14 = arith.constant 0 : index
    %c128 = arith.constant 128 : index
    %17 = vector.load %arg7[%c0_14, %c128] : memref<1x384xf32, #tpu.memory_space<vmem>>, vector<1x128xf32>
    %18 = vector.broadcast %17 : vector<1x128xf32> to vector<16x128xf32>
    %19 = arith.addf %16, %18 : vector<16x128xf32>
    %cst_15 = arith.constant 0.000000e+00 : f32
    %20 = vector.broadcast %cst_15 : f32 to vector<16x128xf32>
    %21 = arith.maximumf %19, %20 : vector<16x128xf32>
    %22 = arith.truncf %21 : vector<16x128xf32> to vector<16x128xbf16>
    %c0_16 = arith.constant 0 : index
    %c0_17 = arith.constant 0 : index
    %23 = vector.load %arg6[%c0_16, %c0_17] : memref<128x128xbf16, #tpu.memory_space<vmem>>, vector<128x128xbf16>
    %cst_18 = arith.constant dense<0.000000e+00> : vector<16x128xf32>
    %24 = tpu.matmul %22, %23, %cst_18 {dimension_numbers = #tpu.dot_dimension_numbers<[1], [0], [0], [1], [0, 0, 1, 1], [], []>} : vector<16x128xbf16>, vector<128x128xbf16>, vector<16x128xf32> -> vector<16x128xf32>
    %c0_19 = arith.constant 0 : index
    %c256 = arith.constant 256 : index
    %25 = vector.load %arg7[%c0_19, %c256] : memref<1x384xf32, #tpu.memory_space<vmem>>, vector<1x128xf32>
    %26 = vector.broadcast %25 : vector<1x128xf32> to vector<16x128xf32>
    %27 = arith.addf %24, %26 : vector<16x128xf32>
    %cst_20 = arith.constant 5.000000e-01 : f32
    %28 = vector.broadcast %cst_20 : f32 to vector<16x128xf32>
    %29 = arith.mulf %28, %27 : vector<16x128xf32>
    %30 = math.tanh %29 : vector<16x128xf32>
    %cst_21 = arith.constant 5.000000e-01 : f32
    %31 = vector.broadcast %cst_21 : f32 to vector<16x128xf32>
    %32 = arith.mulf %31, %30 : vector<16x128xf32>
    %cst_22 = arith.constant 5.000000e-01 : f32
    %33 = vector.broadcast %cst_22 : f32 to vector<16x128xf32>
    %34 = arith.addf %32, %33 : vector<16x128xf32>
    %35 = arith.truncf %34 : vector<16x128xf32> to vector<16x128xbf16>
    %c0_23 = arith.constant 0 : index
    %c0_24 = arith.constant 0 : index
    %36 = vector.load %arg8[%c0_23, %c0_24] : memref<16x128xbf16, #tpu.memory_space<vmem>>, vector<16x128xbf16>
    tpu.vector_store %arg8[%c0_23, %c0_24], %35 {strides = array<i32>} : memref<16x128xbf16, #tpu.memory_space<vmem>>, vector<16x128xbf16>,
    return
  }
  func.func @transform_0(%arg0: i32) -> (i32, i32) {
    %c0_i32 = arith.constant 0 : i32
    %c0_i32_0 = arith.constant 0 : i32
    return %arg0, %c0_i32 : i32, i32
  }
  func.func @transform_1(%arg0: i32) -> (i32, i32) {
    %c0_i32 = arith.constant 0 : i32
    %c0_i32_0 = arith.constant 0 : i32
    return %arg0, %c0_i32 : i32, i32
  }
  func.func @transform_2(%arg0: i32) -> (i32, i32) {
    %c0_i32 = arith.constant 0 : i32
    %c0_i32_0 = arith.constant 0 : i32
    %c0_i32_1 = arith.constant 0 : i32
    return %c0_i32, %c0_i32_0 : i32, i32
  }
  func.func @transform_3(%arg0: i32) -> (i32, i32) {
    %c0_i32 = arith.constant 0 : i32
    %c0_i32_0 = arith.constant 0 : i32
    %c0_i32_1 = arith.constant 0 : i32
    return %c0_i32, %c0_i32_0 : i32, i32
  }
  func.func @transform_4(%arg0: i32) -> (i32, i32) {
    %c0_i32 = arith.constant 0 : i32
    %c0_i32_0 = arith.constant 0 : i32
    %c0_i32_1 = arith.constant 0 : i32
    return %c0_i32, %c0_i32_0 : i32, i32
  }
  func.func @transform_5(%arg0: i32) -> (i32, i32) {
    %c0_i32 = arith.constant 0 : i32
    %c0_i32_0 = arith.constant 0 : i32
    %c0_i32_1 = arith.constant 0 : i32
    return %c0_i32, %c0_i32_0 : i32, i32
  }
  func.func @transform_6(%arg0: i32) -> (i32, i32) {
    %c0_i32 = arith.constant 0 : i32
    %c0_i32_0 = arith.constant 0 : i32
    %c0_i32_1 = arith.constant 0 : i32
    return %c0_i32, %c0_i32_0 : i32, i32
  }
  func.func @transform_7(%arg0: i32) -> (i32, i32) {
    %c0_i32 = arith.constant 0 : i32
    %c0_i32_0 = arith.constant 0 : i32
    return %arg0, %c0_i32 : i32, i32
  }
}

</mosaic_0001>

<llo_original>
// kernel: tpu_custom_call.1
$region0: #{tpu_custom_call.1}
  #allocation0 [shape = 'u32[]', space=smem, size = 0x4, offset = 0x4, fixed_abs, tag = 'smem constant byte address 0x4 - core index']
  #allocation1 [shape = 'u32[72,128]{1,0:T(1,128)}', space=vmem, size = 0x9000, scoped, tag = 'internal scratch']
  %s0 = inlined_call_operand.hbm [shape: f32[16,40], index: 0, kind: input, shape index: {}]
  %s1 = inlined_call_operand.hbm [shape: f32[16,24], index: 1, kind: input, shape index: {}]
  %s2 = inlined_call_operand.hbm [shape: bf16[40,128], index: 2, kind: input, shape index: {}]
  %s3 = inlined_call_operand.hbm [shape: bf16[24,128], index: 3, kind: input, shape index: {}]
  %s4 = inlined_call_operand.hbm [shape: bf16[128,128], index: 4, kind: input, shape index: {}]
  %s5 = inlined_call_operand.hbm [shape: bf16[128,128], index: 5, kind: input, shape index: {}]
  %s6 = inlined_call_operand.vmem [shape: f32[1,384], index: 6, kind: input, shape index: {}]
  %s7 = inlined_call_operand.hbm [shape: bf16[16,128], index: 7, kind: output, shape index: {}]
  %s8 = sld [smem:[#allocation0]]
  $region62: #{tpu_custom_call.1} parent=0
    _
  %s10 = ssub.s32 1, %s8
  %s11 = scalar_select 0, %s10, %s8
  $region1: #{tpu_custom_call.1} parent=0
    #allocation2 [shape = 'u8[8192]{0}', space=vmem, size = 0x2000, scoped, tag = 'input window, operand 0, single buffered']
    #allocation3 [shape = 's32[1]{0}', space=sflag, size = 0x4, scoped, tag = 'scoped memory for tpu_custom_call.1']
    #allocation4 [shape = 's32[1]{0}', space=sflag, size = 0x4, scoped, tag = 'scoped memory for tpu_custom_call.1']
    #allocation5 [shape = 'u8[8192]{0}', space=vmem, size = 0x2000, scoped, tag = 'input window, operand 1, single buffered']
    #allocation6 [shape = 's32[1]{0}', space=sflag, size = 0x4, scoped, tag = 'scoped memory for tpu_custom_call.1']
    #allocation7 [shape = 'u8[10240]{0}', space=vmem, size = 0x2800, scoped, tag = 'input window, operand 2, single buffered']
    #allocation8 [shape = 'u8[6144]{0}', space=vmem, size = 0x1800, scoped, tag = 'input window, operand 3, single buffered']
    #allocation9 [shape = 's32[1]{0}', space=sflag, size = 0x4, scoped, tag = 'scoped memory for tpu_custom_call.1']
    #allocation10 [shape = 'u8[32768]{0}', space=vmem, size = 0x8000, scoped, tag = 'input window, operand 4, single buffered']
    #allocation11 [shape = 'u8[32768]{0}', space=vmem, size = 0x8000, scoped, tag = 'input window, operand 5, single buffered']
    #allocation12 [shape = 's32[1]{0}', space=sflag, size = 0x4, scoped, tag = 'scoped memory for tpu_custom_call.1']
    #allocation13 [shape = 'u8[4096]{0}', space=vmem, size = 0x1000, scoped, tag = 'output window, operand 0, single buffered']
    %12 = vsyncpa [#allocation3], 0
    %13 = vsyncpa [#allocation6], 0
    %14 = vsyncpa [#allocation9], 0
    %15 = vsyncpa [#allocation12], 0
    %16 = vsyncpa [#allocation4], 0
    // Predicated region
    $region2: #{tpu_custom_call.1} parent=1 // pred_check
      _
    $region3: #{tpu_custom_call.1} parent=1 // pred_check_branch
      %18 = sbr.rel (0) target = $region5
    $region4: #{tpu_custom_call.1} parent=1 // pred_region
      %20 = vsyncadd [#allocation3], 0
      %s21 = sshll.u32 %s0, 4
      %s22 = int_to_ptr.hbm [resolvable:$true] %s21
      %s23 = sshll.u32 [#allocation2], 4
      %s24 = int_to_ptr.vmem [resolvable:$true] %s23
      %29 = dma.hbm_to_vmem [thread:$0]  %s22, 256, %s24, [#allocation3], 128, 128, 8
    $region5: #{tpu_custom_call.1} parent=1 // pred_fallthru
      _
    // Predicated region
    $region6: #{tpu_custom_call.1} parent=1 // pred_check
      _
    $region7: #{tpu_custom_call.1} parent=1 // pred_check_branch
      %31 = sbr.rel (0) target = $region9
    $region8: #{tpu_custom_call.1} parent=1 // pred_region
      %33 = vsyncadd [#allocation6], 0
      %s34 = sshll.u32 %s1, 4
      %s35 = int_to_ptr.hbm [resolvable:$true] %s34
      %s36 = sshll.u32 [#allocation5], 4
      %s37 = int_to_ptr.vmem [resolvable:$true] %s36
      %42 = dma.hbm_to_vmem [thread:$0]  %s35, 256, %s37, [#allocation6], 128, 128, 8
    $region9: #{tpu_custom_call.1} parent=1 // pred_fallthru
      _
    // Predicated region
    $region10: #{tpu_custom_call.1} parent=1 // pred_check
      _
    $region11: #{tpu_custom_call.1} parent=1 // pred_check_branch
      %44 = sbr.rel (0) target = $region13
    $region12: #{tpu_custom_call.1} parent=1 // pred_region
      %46 = vsyncadd [#allocation6], 0
      %s47 = sshll.u32 %s2, 4
      %s48 = int_to_ptr.hbm [resolvable:$true] %s47
      %s49 = sshll.u32 [#allocation7], 4
      %s50 = int_to_ptr.vmem [resolvable:$true] %s49
      %55 = dma.hbm_to_vmem [thread:$0]  %s48, 320, %s50, [#allocation6], 64, 64, 4
    $region13: #{tpu_custom_call.1} parent=1 // pred_fallthru
      _
    // Predicated region
    $region14: #{tpu_custom_call.1} parent=1 // pred_check
      _
    $region15: #{tpu_custom_call.1} parent=1 // pred_check_branch
      %57 = sbr.rel (0) target = $region17
    $region16: #{tpu_custom_call.1} parent=1 // pred_region
      %59 = vsyncadd [#allocation9], 0
      %s60 = sshll.u32 %s3, 4
      %s61 = int_to_ptr.hbm [resolvable:$true] %s60
      %s62 = sshll.u32 [#allocation8], 4
      %s63 = int_to_ptr.vmem [resolvable:$true] %s62
      %68 = dma.hbm_to_vmem [thread:$0]  %s61, 192, %s63, [#allocation9], 64, 64, 4
    $region17: #{tpu_custom_call.1} parent=1 // pred_fallthru
      _
    // Predicated region
    $region18: #{tpu_custom_call.1} parent=1 // pred_check
      _
    $region19: #{tpu_custom_call.1} parent=1 // pred_check_branch
      %70 = sbr.rel (0) target = $region21
    $region20: #{tpu_custom_call.1} parent=1 // pred_region
      %72 = vsyncadd [#allocation9], 0
      %s73 = sshll.u32 %s4, 4
      %s74 = int_to_ptr.hbm [resolvable:$true] %s73
      %s75 = sshll.u32 [#allocation10], 4
      %s76 = int_to_ptr.vmem [resolvable:$true] %s75
      %81 = dma.hbm_to_vmem [thread:$0]  %s74, 1024, %s76, [#allocation9], 64, 64, 4
    $region21: #{tpu_custom_call.1} parent=1 // pred_fallthru
      _
    // Predicated region
    $region22: #{tpu_custom_call.1} parent=1 // pred_check
      _
    $region23: #{tpu_custom_call.1} parent=1 // pred_check_branch
      %83 = sbr.rel (0) target = $region25
    $region24: #{tpu_custom_call.1} parent=1 // pred_region
      %85 = vsyncadd [#allocation12], 0
      %s86 = sshll.u32 %s5, 4
      %s87 = int_to_ptr.hbm [resolvable:$true] %s86
      %s88 = sshll.u32 [#allocation11], 4
      %s89 = int_to_ptr.vmem [resolvable:$true] %s88
      %94 = dma.hbm_to_vmem [thread:$0]  %s87, 1024, %s89, [#allocation12], 64, 64, 4
    $region25: #{tpu_custom_call.1} parent=1 // pred_fallthru
      _
    // Predicated region
    $region26: #{tpu_custom_call.1} parent=1 // pred_check
      _
    $region27: #{tpu_custom_call.1} parent=1 // pred_check_branch
      %96 = sbr.rel (0) target = $region29
    $region28: #{tpu_custom_call.1} parent=1 // pred_region
      _
    $region29: #{tpu_custom_call.1} parent=1 // pred_fallthru
      _
    // Predicated region
    $region30: #{tpu_custom_call.1} parent=1 // pred_check
      _
    $region31: #{tpu_custom_call.1} parent=1 // pred_check_branch
      %98 = sbr.rel (0) target = $region33
    $region32: #{tpu_custom_call.1} parent=1 // pred_region
      %100 = dma.done [#allocation3], 256
    $region33: #{tpu_custom_call.1} parent=1 // pred_fallthru
      _
    // Predicated region
    $region34: #{tpu_custom_call.1} parent=1 // pred_check
      _
    $region35: #{tpu_custom_call.1} parent=1 // pred_check_branch
      %102 = sbr.rel (0) target = $region37
    $region36: #{tpu_custom_call.1} parent=1 // pred_region
      %104 = dma.done [#allocation6], 256
    $region37: #{tpu_custom_call.1} parent=1 // pred_fallthru
      _
    // Predicated region
    $region38: #{tpu_custom_call.1} parent=1 // pred_check
      _
    $region39: #{tpu_custom_call.1} parent=1 // pred_check_branch
      %106 = sbr.rel (0) target = $region41
    $region40: #{tpu_custom_call.1} parent=1 // pred_region
      %108 = dma.done [#allocation6], 320
    $region41: #{tpu_custom_call.1} parent=1 // pred_fallthru
      _
    // Predicated region
    $region42: #{tpu_custom_call.1} parent=1 // pred_check
      _
    $region43: #{tpu_custom_call.1} parent=1 // pred_check_branch
      %110 = sbr.rel (0) target = $region45
    $region44: #{tpu_custom_call.1} parent=1 // pred_region
      %112 = dma.done [#allocation9], 192
    $region45: #{tpu_custom_call.1} parent=1 // pred_fallthru
      _
    // Predicated region
    $region46: #{tpu_custom_call.1} parent=1 // pred_check
      _
    $region47: #{tpu_custom_call.1} parent=1 // pred_check_branch
      %114 = sbr.rel (0) target = $region49
    $region48: #{tpu_custom_call.1} parent=1 // pred_region
      %116 = dma.done [#allocation9], 1024
    $region49: #{tpu_custom_call.1} parent=1 // pred_fallthru
      _
    // Predicated region
    $region50: #{tpu_custom_call.1} parent=1 // pred_check
      _
    $region51: #{tpu_custom_call.1} parent=1 // pred_check_branch
      %118 = sbr.rel (0) target = $region53
    $region52: #{tpu_custom_call.1} parent=1 // pred_region
      %120 = dma.done [#allocation12], 1024
    $region53: #{tpu_custom_call.1} parent=1 // pred_fallthru
      _
    %v122 = vld [vmem:[#allocation2] sm:$0xff]
    %v123 = vld [vmem:[#allocation2 + $0x8] sm:$0xff]
    %v124 = vpack.c.bf16 %v123, %v122
    %v125 = vld [vmem:[#allocation7] sm:$0xf]
    %v126 = vld [vmem:[#allocation7 + $0x4] sm:$0xf]
    %v127 = vld [vmem:[#allocation7 + $0x8] sm:$0xf]
    %v128 = vld [vmem:[#allocation7 + $0xc] sm:$0xf]
    %v129 = vld [vmem:[#allocation7 + $0x10] sm:$0xf]
    %v130 = vld [vmem:[#allocation5] sm:$0xff]
    %v131 = vld [vmem:[#allocation5 + $0x8] sm:$0xff]
    %v132 = vpack.c.bf16 %v131, %v130
    %v133 = vld [vmem:[#allocation8] sm:$0xf]
    %v134 = vld [vmem:[#allocation8 + $0x4] sm:$0xf]
    %v135 = vld [vmem:[#allocation8 + $0x8] sm:$0xf]
    %v139 = vunpack.c.l.b16 %v133
    %v140 = vunpack.c.l.b16 %v134
    %v141 = vunpack.c.l.b16 %v135
    %v142 = vpack.c.b16 %v140, %v139
    %v143 = vpack.c.b16 %v141, %v141
    %vm145 = vcmask 195584
    %v147 = vsel %vm145, %v132, 0
    %vm149 = vcmask 1043456
    %v151 = vsel %vm149, %v143, 0
    %153 = vmatpush.bf16.msra.mxu0 0
    %154 = vmatpush.bf16.msra.mxu0 0
    %155 = vmatpush.bf16.msra.mxu0 0
    %156 = vmatpush.bf16.msra.mxu0 0
    %157 = vmatpush.bf16.msra.mxu0 0
    %158 = vmatpush.bf16.msra.mxu0 0
    %159 = vmatpush.bf16.msra.mxu0 %v151
    %160 = vmatpush.bf16.msra.mxu0 %v142
    %161 = vmatmul.bf16.gmra.mxu0 %v147
    %v162 = vpop.f32.mrf.mxu0
    %v163 = vadd.f32 0.0, %v162
    %v164 = vpop.f32.mrf.mxu0
    %v165 = vadd.f32 0.0, %v164
    %166 = vdwg.mxu0
    %v172 = vunpack.c.l.b16 %v125
    %v173 = vunpack.c.l.b16 %v126
    %v174 = vunpack.c.l.b16 %v127
    %v175 = vunpack.c.l.b16 %v128
    %v176 = vunpack.c.l.b16 %v129
    %v177 = vpack.c.b16 %v173, %v172
    %v178 = vpack.c.b16 %v175, %v174
    %v179 = vpack.c.b16 %v176, %v176
    %vm182 = vcmask 326656
    %v184 = vsel %vm182, %v124, 0
    %v187 = vsel %vm149, %v179, 0
    %189 = vmatpush.bf16.msra.mxu0 0
    %190 = vmatpush.bf16.msra.mxu0 0
    %191 = vmatpush.bf16.msra.mxu0 0
    %192 = vmatpush.bf16.msra.mxu0 0
    %193 = vmatpush.bf16.msra.mxu0 0
    %194 = vmatpush.bf16.msra.mxu0 %v187
    %195 = vmatpush.bf16.msra.mxu0 %v178
    %196 = vmatpush.bf16.msra.mxu0 %v177
    %197 = vmatmul.bf16.gmra.mxu0 %v184
    %v198 = vpop.f32.mrf.mxu0
    %v199 = vadd.f32 %v163, %v198
    %v200 = vpop.f32.mrf.mxu0
    %v201 = vadd.f32 %v165, %v200
    %202 = vdwg.mxu0
    %v203 = vld [vmem:[%s6] sm:$0x1]
    %v205 = vperm.slane %v203, 0
    %v207 = vadd.f32 %v199, %v205
    %v208 = vadd.f32 %v201, %v205
    %v209 = vmax.f32 %v207, 0.0
    %v210 = vmax.f32 %v208, 0.0
    %v211 = vpack.c.bf16 %v210, %v209
    %v212 = vld [vmem:[#allocation10] sm:$0xf]
    %v213 = vld [vmem:[#allocation10 + $0x4] sm:$0xf]
    %v214 = vld [vmem:[#allocation10 + $0x8] sm:$0xf]
    %v215 = vld [vmem:[#allocation10 + $0xc] sm:$0xf]
    %v216 = vld [vmem:[#allocation10 + $0x10] sm:$0xf]
    %v217 = vld [vmem:[#allocation10 + $0x14] sm:$0xf]
    %v218 = vld [vmem:[#allocation10 + $0x18] sm:$0xf]
    %v219 = vld [vmem:[#allocation10 + $0x1c] sm:$0xf]
    %v220 = vld [vmem:[#allocation10 + $0x20] sm:$0xf]
    %v221 = vld [vmem:[#allocation10 + $0x24] sm:$0xf]
    %v222 = vld [vmem:[#allocation10 + $0x28] sm:$0xf]
    %v223 = vld [vmem:[#allocation10 + $0x2c] sm:$0xf]
    %v224 = vld [vmem:[#allocation10 + $0x30] sm:$0xf]
    %v225 = vld [vmem:[#allocation10 + $0x34] sm:$0xf]
    %v226 = vld [vmem:[#allocation10 + $0x38] sm:$0xf]
    %v227 = vld [vmem:[#allocation10 + $0x3c] sm:$0xf]
    %v228 = vld [vmem:[%s6 + $0x1] sm:$0x1]
    %v230 = vperm.slane %v228, 0
    %v248 = vunpack.c.l.b16 %v212
    %v249 = vunpack.c.l.b16 %v213
    %v250 = vunpack.c.l.b16 %v214
    %v251 = vunpack.c.l.b16 %v215
    %v252 = vunpack.c.l.b16 %v216
    %v253 = vunpack.c.l.b16 %v217
    %v254 = vunpack.c.l.b16 %v218
    %v255 = vunpack.c.l.b16 %v219
    %v256 = vunpack.c.l.b16 %v220
    %v257 = vunpack.c.l.b16 %v221
    %v258 = vunpack.c.l.b16 %v222
    %v259 = vunpack.c.l.b16 %v223
    %v260 = vunpack.c.l.b16 %v224
    %v261 = vunpack.c.l.b16 %v225
    %v262 = vunpack.c.l.b16 %v226
    %v263 = vunpack.c.l.b16 %v227
    %v264 = vpack.c.b16 %v249, %v248
    %v265 = vpack.c.b16 %v251, %v250
    %v266 = vpack.c.b16 %v253, %v252
    %v267 = vpack.c.b16 %v255, %v254
    %v268 = vpack.c.b16 %v257, %v256
    %v269 = vpack.c.b16 %v259, %v258
    %v270 = vpack.c.b16 %v261, %v260
    %v271 = vpack.c.b16 %v263, %v262
    %280 = vmatpush.bf16.msra.mxu0 %v271
    %281 = vmatpush.bf16.msra.mxu0 %v270
    %282 = vmatpush.bf16.msra.mxu0 %v269
    %283 = vmatpush.bf16.msra.mxu0 %v268
    %284 = vmatpush.bf16.msra.mxu0 %v267
    %285 = vmatpush.bf16.msra.mxu0 %v266
    %286 = vmatpush.bf16.msra.mxu0 %v265
    %287 = vmatpush.bf16.msra.mxu0 %v264
    %288 = vmatmul.bf16.gmra.mxu0 %v211
    %v289 = vpop.f32.mrf.mxu0
    %v290 = vadd.f32 %v230, %v289
    %v291 = vpop.f32.mrf.mxu0
    %v292 = vadd.f32 %v230, %v291
    %293 = vdwg.mxu0
    %v294 = vmax.f32 %v290, 0.0
    %v295 = vmax.f32 %v292, 0.0
    %v296 = vpack.c.bf16 %v295, %v294
    %v297 = vld [vmem:[#allocation11] sm:$0xf]
    %v298 = vld [vmem:[#allocation11 + $0x4] sm:$0xf]
    %v299 = vld [vmem:[#allocation11 + $0x8] sm:$0xf]
    %v300 = vld [vmem:[#allocation11 + $0xc] sm:$0xf]
    %v301 = vld [vmem:[#allocation11 + $0x10] sm:$0xf]
    %v302 = vld [vmem:[#allocation11 + $0x14] sm:$0xf]
    %v303 = vld [vmem:[#allocation11 + $0x18] sm:$0xf]
    %v304 = vld [vmem:[#allocation11 + $0x1c] sm:$0xf]
    %v305 = vld [vmem:[#allocation11 + $0x20] sm:$0xf]
    %v306 = vld [vmem:[#allocation11 + $0x24] sm:$0xf]
    %v307 = vld [vmem:[#allocation11 + $0x28] sm:$0xf]
    %v308 = vld [vmem:[#allocation11 + $0x2c] sm:$0xf]
    %v309 = vld [vmem:[#allocation11 + $0x30] sm:$0xf]
    %v310 = vld [vmem:[#allocation11 + $0x34] sm:$0xf]
    %v311 = vld [vmem:[#allocation11 + $0x38] sm:$0xf]
    %v312 = vld [vmem:[#allocation11 + $0x3c] sm:$0xf]
    %v313 = vld [vmem:[%s6 + $0x2] sm:$0x1]
    %v315 = vperm.slane %v313, 0
    %v333 = vunpack.c.l.b16 %v297
    %v334 = vunpack.c.l.b16 %v298
    %v335 = vunpack.c.l.b16 %v299
    %v336 = vunpack.c.l.b16 %v300
    %v337 = vunpack.c.l.b16 %v301
    %v338 = vunpack.c.l.b16 %v302
    %v339 = vunpack.c.l.b16 %v303
    %v340 = vunpack.c.l.b16 %v304
    %v341 = vunpack.c.l.b16 %v305
    %v342 = vunpack.c.l.b16 %v306
    %v343 = vunpack.c.l.b16 %v307
    %v344 = vunpack.c.l.b16 %v308
    %v345 = vunpack.c.l.b16 %v309
    %v346 = vunpack.c.l.b16 %v310
    %v347 = vunpack.c.l.b16 %v311
    %v348 = vunpack.c.l.b16 %v312
    %v349 = vpack.c.b16 %v334, %v333
    %v350 = vpack.c.b16 %v336, %v335
    %v351 = vpack.c.b16 %v338, %v337
    %v352 = vpack.c.b16 %v340, %v339
    %v353 = vpack.c.b16 %v342, %v341
    %v354 = vpack.c.b16 %v344, %v343
    %v355 = vpack.c.b16 %v346, %v345
    %v356 = vpack.c.b16 %v348, %v347
    %365 = vmatpush.bf16.msra.mxu0 %v356
    %366 = vmatpush.bf16.msra.mxu0 %v355
    %367 = vmatpush.bf16.msra.mxu0 %v354
    %368 = vmatpush.bf16.msra.mxu0 %v353
    %369 = vmatpush.bf16.msra.mxu0 %v352
    %370 = vmatpush.bf16.msra.mxu0 %v351
    %371 = vmatpush.bf16.msra.mxu0 %v350
    %372 = vmatpush.bf16.msra.mxu0 %v349
    %373 = vmatmul.bf16.gmra.mxu0 %v296
    %v374 = vpop.f32.mrf.mxu0
    %v375 = vadd.f32 %v315, %v374
    %v376 = vpop.f32.mrf.mxu0
    %v377 = vadd.f32 %v315, %v376
    %378 = vdwg.mxu0
    %v379 = vmul.f32 %v375, 0.5
    %v380 = vmul.f32 %v377, 0.5
    %v381 = vtanh.pop %v379
    %v382 = vtanh.pop %v380
    %v383 = vmul.f32 %v381, 0.5
    %v384 = vmul.f32 %v382, 0.5
    %v385 = vadd.f32 %v383, 0.5
    %v386 = vadd.f32 %v384, 0.5
    %v387 = vpack.c.bf16 %v385, %v385
    %v388 = vpack.c.bf16 %v386, %v386
    %389 = vst [vmem:[#allocation13] sm:$0xf] %v387
    %390 = vst [vmem:[#allocation13 + $0x4] sm:$0xf] %v388
    // Predicated region
    $region54: #{tpu_custom_call.1} parent=1 // pred_check
      _
    $region55: #{tpu_custom_call.1} parent=1 // pred_check_branch
      %392 = sbr.rel (0) target = $region57
    $region56: #{tpu_custom_call.1} parent=1 // pred_region
      %394 = vsyncadd [#allocation4], 0
      %s395 = sshll.u32 [#allocation13], 4
      %s396 = int_to_ptr.vmem [resolvable:$true] %s395
      %s397 = sshll.u32 %s7, 4
      %s398 = int_to_ptr.hbm [resolvable:$true] %s397
      %403 = dma.vmem_to_hbm [thread:$0]  %s396, 128, %s398, [#allocation4], 64, 64, 4
    $region57: #{tpu_custom_call.1} parent=1 // pred_fallthru
      _
    // Predicated region
    $region58: #{tpu_custom_call.1} parent=1 // pred_check
      _
    $region59: #{tpu_custom_call.1} parent=1 // pred_check_branch
      %405 = sbr.rel (0) target = $region61
    $region60: #{tpu_custom_call.1} parent=1 // pred_region
      %407 = dma.done [#allocation4], 128
    $region61: #{tpu_custom_call.1} parent=1 // pred_fallthru
      _
    %408 = vsyncpa [#allocation3], 1
    %409 = vsyncpa [#allocation6], 1
    %410 = vsyncpa [#allocation9], 1
    %411 = vsyncpa [#allocation12], 1
    %412 = vsyncpa [#allocation4], 1

</llo_original>
